<compile_context>
chip_gen: v6e
topology: v6e:2x2x1
jax: 0.10.0
libtpu: 0.0.40
codegen_flags: <defaults>
</compile_context>

<pallas_src>
import functools

import jax
import jax.numpy as jnp
from jax.experimental import pallas as pl
from jax.experimental.pallas import tpu as pltpu

LANE = 512                             # lane-dense last dim (multiple of 128)
TARGET_BLOCK_BYTES = 2 * 1024 * 1024   # ~2 MiB per pipelined buffer
MAX_SLICE_BYTES = 8 * 1024 * 1024      # cap for the 3-D full-(H,W) fallback
VMEM_LIMIT_BYTES = 32 * 1024 * 1024    # explicit scoped-VMEM limit (all gens)


def _scale_kernel(x_ref, o_ref, *, scale):
    # Residual chain with identity sublayers, fused: out = x * 2**layers.
    # NOTE: for float dtypes with very large `layers` the constant would
    # overflow to inf (matching repeated doubling's overflow behavior).
    o_ref[...] = x_ref[...] * jnp.asarray(scale, x_ref.dtype)


def _round_up(n: int, m: int) -> int:
    return ((n + m - 1) // m) * m


def _compiler_params():
    return pltpu.CompilerParams(
        dimension_semantics=("parallel",),
        vmem_limit_bytes=VMEM_LIMIT_BYTES,
    )


def _cost_estimate(total: int, itemsize: int):
    return pl.CostEstimate(
        flops=total, transcendentals=0, bytes_accessed=2 * total * itemsize
    )


def _run_2d(x2d, kernel, tile_rows, total, itemsize):
    rows, lane = x2d.shape
    grid = (pl.cdiv(rows, tile_rows),)
    return pl.pallas_call(
        kernel,
        out_shape=jax.ShapeDtypeStruct((rows, lane), x2d.dtype),
        grid_spec=pltpu.PrefetchScalarGridSpec(
            num_scalar_prefetch=0,
            grid=grid,
            in_specs=[pl.BlockSpec((tile_rows, lane), lambda i: (i, 0))],
            out_specs=pl.BlockSpec((tile_rows, lane), lambda i: (i, 0)),
        ),
        compiler_params=_compiler_params(),
        cost_estimate=_cost_estimate(total, itemsize),
        input_output_aliases={0: 0},
    )(x2d)


def _run_3d(x3d, kernel, tile_lead, total, itemsize):
    lead, h, w = x3d.shape
    grid = (pl.cdiv(lead, tile_lead),)
    return pl.pallas_call(
        kernel,
        out_shape=jax.ShapeDtypeStruct((lead, h, w), x3d.dtype),
        grid_spec=pltpu.PrefetchScalarGridSpec(
            num_scalar_prefetch=0,
            grid=grid,
            # Full H, W block dims waive the (8,128) divisibility constraint.
            in_specs=[pl.BlockSpec((tile_lead, h, w), lambda i: (i, 0, 0))],
            out_specs=pl.BlockSpec((tile_lead, h, w), lambda i: (i, 0, 0)),
        ),
        compiler_params=_compiler_params(),
        cost_estimate=_cost_estimate(total, itemsize),
        input_output_aliases={0: 0},
    )(x3d)


def _residual_block_impl(x, layers):
    orig_shape = x.shape
    dtype = x.dtype
    itemsize = jnp.dtype(dtype).itemsize
    total = int(x.size)
    scale = 2 ** layers
    kernel = functools.partial(_scale_kernel, scale=scale)

    # Sublane granularity per dtype packing: f32 -> 8, bf16 -> 16, int8 -> 32.
    sub = max(8, 32 // itemsize)
    # ~2 MiB per block regardless of dtype (tile_rows grows as itemsize shrinks).
    target_rows = max(sub, TARGET_BLOCK_BYTES // (LANE * itemsize))

    if total % LANE == 0:
        # Fast path: free reshape to a lane-dense slab, no pad / slice copies.
        rows = total // LANE
        x2d = x.reshape(rows, LANE)
        if rows <= target_rows:
            tile_rows = rows                      # full dim -> constraint waived
        else:
            tile_rows = _round_up(target_rows, sub)
        out = _run_2d(x2d, kernel, tile_rows, total, itemsize)
        return out.reshape(orig_shape)

    if x.ndim >= 2:
        h, w = x.shape[-2], x.shape[-1]
    else:
        h, w = 1, max(total, 1)
    slice_bytes = h * w * itemsize

    if slice_bytes <= MAX_SLICE_BYTES:
        # Misaligned total: tile only the leading (B*C) axis; no padding.
        lead = total // (h * w)
        x3d = x.reshape(lead, h, w)
        tile_lead = max(1, min(lead, TARGET_BLOCK_BYTES // slice_bytes))
        out = _run_3d(x3d, kernel, tile_lead, total, itemsize)
        return out.reshape(orig_shape)

    # Last resort (huge, misaligned trailing dims): pad once to a LANE
    # multiple and reuse the lane-dense path.
    padded_total = _round_up(total, LANE)
    rows = padded_total // LANE
    flat = jnp.pad(x.reshape(-1), (0, padded_total - total))
    x2d = flat.reshape(rows, LANE)
    tile_rows = rows if rows <= target_rows else _round_up(target_rows, sub)
    out = _run_2d(x2d, kernel, tile_rows, total, itemsize)
    return out.reshape(-1)[:total].reshape(orig_shape)


# `layers` is a Python-level loop count in the PyTorch module -> static arg.
residual_block = jax.jit(_residual_block_impl, static_argnums=(1,))


if __name__ == "__main__":
    key = jax.random.PRNGKey(0)
    B, C, H, W = 2, 4, 16, 16
    LAYERS = 3  # ResidualBlock(layers=3, activation="relu"); activation unused
    x = jax.random.normal(key, (B, C, H, W), dtype=jnp.float32)

    out = jax.block_until_ready(residual_block(x, LAYERS))
    expected = x * (2.0 ** LAYERS)
    assert out.shape == x.shape and out.dtype == x.dtype
    assert jnp.allclose(out, expected, rtol=1e-6, atol=1e-6)

    # Also exercise the no-pad fallback path (total not a multiple of 512).
    x2 = jax.random.normal(jax.random.PRNGKey(1), (2, 3, 5, 7), jnp.float32)
    out2 = jax.block_until_ready(residual_block(x2, LAYERS))
    assert jnp.allclose(out2, x2 * (2.0 ** LAYERS), rtol=1e-6, atol=1e-6)

    print("KERNEL_OK")
</pallas_src>

<mosaic_0001>
module attributes {stable_mosaic.version = 11 : i64} {
  func.func @_scale_kernel(%arg0: i32, %arg1: memref<4x512xf32, #tpu.memory_space<vmem>>, %arg2: memref<4x512xf32, #tpu.memory_space<vmem>>) attributes {dimension_semantics = [#tpu.dimension_semantics<parallel>], iteration_bounds = array<i64: 1>, scalar_prefetch = 0 : i64, scratch_operands = 0 : i64, tpu.core_type = #tpu.core_type<tc>, window_params = [{transform_indices = @transform_0, window_bounds = array<i64: 4, 512>}, {transform_indices = @transform_1, window_bounds = array<i64: 4, 512>}]} {
    %c0 = arith.constant 0 : index
    %c0_0 = arith.constant 0 : index
    %0 = vector.load %arg1[%c0, %c0_0] : memref<4x512xf32, #tpu.memory_space<vmem>>, vector<4x512xf32>
    %cst = arith.constant 8.000000e+00 : f32
    %1 = vector.broadcast %cst : f32 to vector<4x512xf32>
    %2 = arith.mulf %0, %1 : vector<4x512xf32>
    %c0_1 = arith.constant 0 : index
    %c0_2 = arith.constant 0 : index
    %3 = vector.load %arg2[%c0_1, %c0_2] : memref<4x512xf32, #tpu.memory_space<vmem>>, vector<4x512xf32>
    tpu.vector_store %arg2[%c0_1, %c0_2], %2 {strides = array<i32>} : memref<4x512xf32, #tpu.memory_space<vmem>>, vector<4x512xf32>,
    return
  }
  func.func @transform_0(%arg0: i32) -> (i32, i32) {
    %c0_i32 = arith.constant 0 : i32
    %c0_i32_0 = arith.constant 0 : i32
    return %arg0, %c0_i32 : i32, i32
  }
  func.func @transform_1(%arg0: i32) -> (i32, i32) {
    %c0_i32 = arith.constant 0 : i32
    %c0_i32_0 = arith.constant 0 : i32
    return %arg0, %c0_i32 : i32, i32
  }
}

</mosaic_0001>

<llo_original>
// kernel: _residual_block_impl.1
$region0: #{_residual_block_impl.1}
  #allocation0 [shape = 'u32[]', space=smem, size = 0x4, offset = 0x4, fixed_abs, tag = 'smem constant byte address 0x4 - core index']
  #allocation1 [shape = 'u32[144,128]{1,0:T(1,128)}', space=vmem, size = 0x12000, scoped, tag = 'internal scratch']
  %s0 = inlined_call_operand.vmem [shape: f32[4,512], index: 0, kind: input, shape index: {}, may-alias: {0,1}]
  %s1 = inlined_call_operand.vmem [shape: f32[4,512], index: 1, kind: output, shape index: {}, may-alias: {0,1}]
  %s2 = sld [smem:[#allocation0]]
  $region14: #{_residual_block_impl.1} parent=0
    _
  %s4 = ssub.s32 1, %s2
  %s5 = scalar_select 0, %s4, %s2
  // Predicated region
  $region2: #{_residual_block_impl.1} parent=0 // pred_check
    _
  $region3: #{_residual_block_impl.1} parent=0 // pred_check_branch
    %7 = sbr.rel (0) target = $region5
  $region4: #{_residual_block_impl.1} parent=0 // pred_region
    _
  $region5: #{_residual_block_impl.1} parent=0 // pred_fallthru
    _
  %v8 = vld [vmem:[%s0] sm:$0xff]
  %v9 = vld [vmem:[%s0 + $0x8] sm:$0xff]
  %v10 = vmul.f32 %v8, 8.0
  %v11 = vmul.f32 %v9, 8.0
  %12 = vst [vmem:[%s1] sm:$0xff] %v10
  %13 = vst [vmem:[%s1 + $0x8] sm:$0xff] %v11
  // Predicated region
  $region6: #{_residual_block_impl.1} parent=0 // pred_check
    _
  $region7: #{_residual_block_impl.1} parent=0 // pred_check_branch
    %15 = sbr.rel (0) target = $region9
  $region8: #{_residual_block_impl.1} parent=0 // pred_region
    _
  $region9: #{_residual_block_impl.1} parent=0 // pred_fallthru
    _
  // Predicated region
  $region10: #{_residual_block_impl.1} parent=0 // pred_check
    _
  $region11: #{_residual_block_impl.1} parent=0 // pred_check_branch
    %17 = sbr.rel (0) target = $region13
  $region12: #{_residual_block_impl.1} parent=0 // pred_region
    _
  $region13: #{_residual_block_impl.1} parent=0 // pred_fallthru
    _

</llo_original>
